<compile_context>
chip_gen: v6e
topology: v6e:2x2x1
jax: 0.10.0
libtpu: 0.0.40
codegen_flags: <defaults>
</compile_context>

<pallas_src>
import jax
import jax.numpy as jnp
from jax.experimental import pallas as pl
from jax.experimental.pallas import tpu as pltpu

_LANES = 128
_SUBLANES = 8


def _scale_kernel(w_ref, x_ref, o_ref):
    # w_ref: SMEM scalar (shape (1,), f32); x_ref/o_ref: VMEM tiles.
    x = x_ref[...]
    if jnp.issubdtype(x_ref.dtype, jnp.floating):
        # Native-dtype multiply (no f32 round-trip for bf16 on v6e/v7x;
        # exact for f32 since the weight is already f32).
        o_ref[...] = x * w_ref[0].astype(x_ref.dtype)
    else:
        # Non-float inputs: multiply in f32, cast back.
        o_ref[...] = (w_ref[0] * x.astype(jnp.float32)).astype(o_ref.dtype)


def scale_forward(x, weight, *, target_block_bytes=2 * 1024 * 1024):
    """x: any-shape array. weight: shape-(1,) array. Returns weight * x."""
    orig_shape = x.shape
    orig_dtype = x.dtype
    n = x.size
    if n == 0:
        return x

    itemsize = jnp.dtype(orig_dtype).itemsize

    # ---- choose lane width C: large multiple of 128, shrunk for tiny inputs
    C = 1024
    while C > _LANES and C * _SUBLANES > n:
        C //= 2

    # ---- rows needed (rounded up to a sublane multiple)
    rows_needed = -(-n // C)                                   # cdiv
    rows_needed = -(-rows_needed // _SUBLANES) * _SUBLANES     # multiple of 8

    # ---- block rows: target ~target_block_bytes per block, multiple of 8
    br = max(_SUBLANES,
             (target_block_bytes // (C * itemsize)) // _SUBLANES * _SUBLANES)
    br = min(br, rows_needed)

    # Prefer >= 2 blocks when there is enough data, so the grid can be
    # pipelined and sharded across TensorCores (v7x megacore).
    if rows_needed // br < 2 and rows_needed >= 2 * _SUBLANES:
        br_half = max(_SUBLANES, (rows_needed // 2) // _SUBLANES * _SUBLANES)
        br = min(br, br_half)

    # ---- pad so the grid divides exactly (no masked partial stores)
    num_blocks = -(-rows_needed // br)
    R = num_blocks * br
    n_pad = R * C

    flat = x.reshape(-1)
    if n_pad != n:
        flat = jnp.pad(flat, (0, n_pad - n))
    x2d = flat.reshape(R, C)

    out2d = pl.pallas_call(
        _scale_kernel,
        out_shape=jax.ShapeDtypeStruct((R, C), orig_dtype),
        grid_spec=pltpu.PrefetchScalarGridSpec(
            num_scalar_prefetch=0,
            grid=(num_blocks,),
            in_specs=[
                pl.BlockSpec(memory_space=pltpu.SMEM),        # scalar weight
                pl.BlockSpec((br, C), lambda i: (i, 0)),      # input tile
            ],
            out_specs=pl.BlockSpec((br, C), lambda i: (i, 0)),
        ),
        compiler_params=pltpu.CompilerParams(
            dimension_semantics=("parallel",),
        ),
    )(weight.astype(jnp.float32).reshape(-1), x2d)

    out = out2d.reshape(-1)
    if n_pad != n:
        out = out[:n]
    return out.reshape(orig_shape)


class Scale:
    """JAX mirror of the PyTorch Scale module (scalar learnable gain, init 1.0)."""

    def __init__(self):
        self.weight = jnp.ones((1,), dtype=jnp.float32)

    def __call__(self, x):
        return scale_forward(x, self.weight)


if __name__ == "__main__":
    key = jax.random.PRNGKey(0)

    # NCHW input, small shape (aligned path)
    x = jax.random.normal(key, (2, 4, 16, 16), dtype=jnp.float32)

    mod = Scale()
    out = jax.block_until_ready(mod(x))
    assert out.shape == x.shape and out.dtype == x.dtype
    assert jnp.allclose(out, 1.0 * x, atol=1e-6, rtol=1e-6)

    # Non-trivial scalar
    mod.weight = jnp.array([2.5], dtype=jnp.float32)
    out2 = jax.block_until_ready(mod(x))
    assert jnp.allclose(out2, 2.5 * x, atol=1e-6, rtol=1e-6)

    # Unaligned size exercises the pad-and-slice path
    k2 = jax.random.PRNGKey(1)
    x_odd = jax.random.normal(k2, (3, 5, 7, 9), dtype=jnp.float32)
    out3 = jax.block_until_ready(scale_forward(x_odd, mod.weight))
    assert out3.shape == x_odd.shape
    assert jnp.allclose(out3, 2.5 * x_odd, atol=1e-6, rtol=1e-6)

    # bf16 path (native-dtype compute, no f32 round-trip)
    x_bf16 = x.astype(jnp.bfloat16)
    out4 = jax.block_until_ready(scale_forward(x_bf16, mod.weight))
    assert out4.dtype == jnp.bfloat16
    assert jnp.allclose(out4.astype(jnp.float32),
                        (jnp.bfloat16(2.5) * x_bf16).astype(jnp.float32),
                        atol=2e-2, rtol=2e-2)

    print("KERNEL_OK")
</pallas_src>

<mosaic_0001>
module attributes {stable_mosaic.version = 11 : i64} {
  func.func @_scale_kernel(%arg0: i32, %arg1: memref<1xf32, #tpu.memory_space<smem>>, %arg2: memref<8x256xf32, #tpu.memory_space<vmem>>, %arg3: memref<8x256xf32, #tpu.memory_space<vmem>>) attributes {dimension_semantics = [#tpu.dimension_semantics<parallel>], iteration_bounds = array<i64: 1>, scalar_prefetch = 0 : i64, scratch_operands = 0 : i64, tpu.core_type = #tpu.core_type<tc>, window_params = [{transform_indices = @transform_0, window_bounds = array<i64: 1>}, {transform_indices = @transform_1, window_bounds = array<i64: 8, 256>}, {transform_indices = @transform_2, window_bounds = array<i64: 8, 256>}]} {
    %c0 = arith.constant 0 : index
    %c0_0 = arith.constant 0 : index
    %0 = vector.load %arg2[%c0, %c0_0] : memref<8x256xf32, #tpu.memory_space<vmem>>, vector<8x256xf32>
    %c0_1 = arith.constant 0 : index
    %1 = memref.load %arg1[%c0_1] : memref<1xf32, #tpu.memory_space<smem>>
    %2 = vector.broadcast %1 : f32 to vector<8x256xf32>
    %3 = arith.mulf %0, %2 : vector<8x256xf32>
    %c0_2 = arith.constant 0 : index
    %c0_3 = arith.constant 0 : index
    %4 = vector.load %arg3[%c0_2, %c0_3] : memref<8x256xf32, #tpu.memory_space<vmem>>, vector<8x256xf32>
    tpu.vector_store %arg3[%c0_2, %c0_3], %3 {strides = array<i32>} : memref<8x256xf32, #tpu.memory_space<vmem>>, vector<8x256xf32>,
    return
  }
  func.func @transform_0(%arg0: i32) -> i32 {
    %c0_i32 = arith.constant 0 : i32
    %c0_i32_0 = arith.constant 0 : i32
    return %c0_i32 : i32
  }
  func.func @transform_1(%arg0: i32) -> (i32, i32) {
    %c0_i32 = arith.constant 0 : i32
    %c0_i32_0 = arith.constant 0 : i32
    return %arg0, %c0_i32 : i32, i32
  }
  func.func @transform_2(%arg0: i32) -> (i32, i32) {
    %c0_i32 = arith.constant 0 : i32
    %c0_i32_0 = arith.constant 0 : i32
    return %arg0, %c0_i32 : i32, i32
  }
}

</mosaic_0001>

<llo_original>
// kernel: tpu_custom_call.1
$region0: #{tpu_custom_call.1}
  #allocation0 [shape = 'u32[]', space=smem, size = 0x4, offset = 0x4, fixed_abs, tag = 'smem constant byte address 0x4 - core index']
  #allocation1 [shape = 'u32[144,128]{1,0:T(1,128)}', space=vmem, size = 0x12000, scoped, tag = 'internal scratch']
  #allocation2 [shape = 'f32[1]{0:T(128)S(6)}', space=smem, size = 0x200, scoped, tag = 'scoped memory for tpu_custom_call.1']
  %s0 = inlined_call_operand.<no memory space> [shape: f32[1], index: 0, kind: input, shape index: {}]
  %s1 = inlined_call_operand.hbm [shape: f32[8,256], index: 1, kind: input, shape index: {}]
  %s2 = inlined_call_operand.hbm [shape: f32[8,256], index: 2, kind: output, shape index: {}]
  %s3 = sld [smem:[#allocation0]]
  $region22: #{tpu_custom_call.1} parent=0
    _
  %s5 = ssub.s32 1, %s3
  %s6 = scalar_select 0, %s5, %s3
  %7 = sst [smem:[#allocation2]] %s0
  $region1: #{tpu_custom_call.1} parent=0
    #allocation3 [shape = 'u8[8192]{0}', space=vmem, size = 0x2000, scoped, tag = 'input window, operand 1, single buffered']
    #allocation4 [shape = 's32[1]{0}', space=sflag, size = 0x4, scoped, tag = 'scoped memory for tpu_custom_call.1']
    #allocation5 [shape = 's32[1]{0}', space=sflag, size = 0x4, scoped, tag = 'scoped memory for tpu_custom_call.1']
    #allocation6 [shape = 'u8[8192]{0}', space=vmem, size = 0x2000, scoped, tag = 'output window, operand 0, single buffered']
    %8 = vsyncpa [#allocation4], 0
    %9 = vsyncpa [#allocation5], 0
    // Predicated region
    $region2: #{tpu_custom_call.1} parent=1 // pred_check
      _
    $region3: #{tpu_custom_call.1} parent=1 // pred_check_branch
      %11 = sbr.rel (0) target = $region5
    $region4: #{tpu_custom_call.1} parent=1 // pred_region
      _
    $region5: #{tpu_custom_call.1} parent=1 // pred_fallthru
      _
    // Predicated region
    $region6: #{tpu_custom_call.1} parent=1 // pred_check
      _
    $region7: #{tpu_custom_call.1} parent=1 // pred_check_branch
      %13 = sbr.rel (0) target = $region9
    $region8: #{tpu_custom_call.1} parent=1 // pred_region
      %s15 = ssub.s32 256, 256
      %16 = vsyncadd [#allocation4], %s15
      %s18 = sshll.u32 [#allocation3], 4
      %s19 = int_to_ptr.vmem [resolvable:$true] %s18
      %21 = dma.hbm_to_vmem [thread:$0]  %s1, 256, %s19, [#allocation4]
    $region9: #{tpu_custom_call.1} parent=1 // pred_fallthru
      _
    // Predicated region
    $region10: #{tpu_custom_call.1} parent=1 // pred_check
      _
    $region11: #{tpu_custom_call.1} parent=1 // pred_check_branch
      %23 = sbr.rel (0) target = $region13
    $region12: #{tpu_custom_call.1} parent=1 // pred_region
      %24 = dma.done [#allocation4], 256
    $region13: #{tpu_custom_call.1} parent=1 // pred_fallthru
      _
    %v25 = vld [vmem:[#allocation3] sm:$0xff]
    %v26 = vld [vmem:[#allocation3 + $0x8] sm:$0xff]
    %s27 = sld [smem:[#allocation2]]
    %v28 = vstv %s27
    %v29 = vmul.f32 %v25, %v28
    %v30 = vmul.f32 %v26, %v28
    %31 = vst [vmem:[#allocation6] sm:$0xff] %v29
    %32 = vst [vmem:[#allocation6 + $0x8] sm:$0xff] %v30
    // Predicated region
    $region14: #{tpu_custom_call.1} parent=1 // pred_check
      _
    $region15: #{tpu_custom_call.1} parent=1 // pred_check_branch
      %34 = sbr.rel (0) target = $region17
    $region16: #{tpu_custom_call.1} parent=1 // pred_region
      %s36 = ssub.s32 256, 256
      %37 = vsyncadd [#allocation5], %s36
      %s39 = sshll.u32 [#allocation6], 4
      %s40 = int_to_ptr.vmem [resolvable:$true] %s39
      %42 = dma.vmem_to_hbm [thread:$0]  %s40, 256, %s2, [#allocation5]
    $region17: #{tpu_custom_call.1} parent=1 // pred_fallthru
      _
    // Predicated region
    $region18: #{tpu_custom_call.1} parent=1 // pred_check
      _
    $region19: #{tpu_custom_call.1} parent=1 // pred_check_branch
      %44 = sbr.rel (0) target = $region21
    $region20: #{tpu_custom_call.1} parent=1 // pred_region
      %45 = dma.done [#allocation5], 256
    $region21: #{tpu_custom_call.1} parent=1 // pred_fallthru
      _
    %46 = vsyncpa [#allocation4], 1
    %47 = vsyncpa [#allocation5], 1

</llo_original>
